<compile_context>
chip_gen: v6e
topology: v6e:2x2x1
jax: 0.10.0
libtpu: 0.0.40
codegen_flags: <defaults>
</compile_context>

<pallas_src>
import functools

import numpy as np
import jax
import jax.numpy as jnp
from jax import lax
from jax.experimental import pallas as pl
from jax.experimental.pallas import tpu as pltpu


# -----------------------------------------------------------------------------
# Parameter initialization (mel initializer) — deterministic numpy glue.
# -----------------------------------------------------------------------------
def hertz_to_mel(x):
    return 2595.0 * np.log10(1.0 + x / 700.0)


def mel_to_hertz(x):
    return 700.0 * (10.0 ** (x / 2595.0) - 1.0)


def mel_init_params(filters, num_spectrogram_bins, sample_rate,
                    lower_edge_hertz=0.0, upper_edge_hertz=None):
    if upper_edge_hertz is None:
        upper_edge_hertz = sample_rate / 2.0
    low_mel = hertz_to_mel(lower_edge_hertz)
    high_mel = hertz_to_mel(upper_edge_hertz)
    f_centers_mel = np.linspace(low_mel, high_mel, filters + 2)
    f_centers_hz = mel_to_hertz(f_centers_mel)[1:-1]
    bands_hz = mel_to_hertz(f_centers_mel)[2:] - mel_to_hertz(f_centers_mel)[:-2]
    # hertz_to_weights
    f_centers_w = 4.0 * f_centers_hz / sample_rate - 1.0
    beta_w = 2.0 * bands_hz / sample_rate
    mu = 0.25 - 2.0 / num_spectrogram_bins
    bands_w = beta_w * 2.0 / mu - 1.0
    # Torch keeps float64 parameters but casts W to float32 before the matmul,
    # so float32 parameters give matching-precision results.
    return (np.expand_dims(f_centers_w, 0).astype(np.float32),
            np.expand_dims(bands_w, 0).astype(np.float32))


# -----------------------------------------------------------------------------
# Static integer power via squaring chain (order is a Python int).
# -----------------------------------------------------------------------------
def _static_int_pow(y, n):
    assert n >= 1
    result = None
    base = y
    while True:
        if n & 1:
            result = base if result is None else result * base
        n >>= 1
        if n == 0:
            break
        base = base * base
    return result


# -----------------------------------------------------------------------------
# Kernel 1: build the (K, F) sinc-gram weight matrix once (pre-transposed so
# the streaming matmul is a plain (K,F) @ (F,T) and W's stores are lane-dense
# along F).
# -----------------------------------------------------------------------------
def sincgram_weights_kernel(fc_ref, bands_ref, w_ref, *, order, eps):
    # fc_ref, bands_ref : (K, 1) float32 (already column-shaped by the wrapper)
    # w_ref             : (K, F) float32
    K, F = w_ref.shape
    fc = fc_ref[...]          # (K, 1)
    bands = bands_ref[...]    # (K, 1)

    # weight_to_beta
    mu = 0.25 - 2.0 / float(F)
    beta = (bands + 1.0) * (mu / 2.0)                       # (K, 1)

    # linspace(-1, 1, F) along the lanes: lin[f] = (2f - (F-1)) / (F-1),
    # exact at the endpoints.
    f_idx = lax.broadcasted_iota(jnp.int32, (K, F), 1).astype(jnp.float32)
    lin = (2.0 * f_idx - float(F - 1)) * (1.0 / float(F - 1))

    y = (lin - fc) / (beta + eps)                           # (K, F)
    # order is even (module stores order*2), so y**order >= 0 and rsqrt is
    # safe.  NOTE: for extremely narrow bands (beta ~ 0, eps == 0) |y|**order
    # can overflow f32 -> W underflows to 0 where the float64 torch path gives
    # a tiny nonzero weight; matches torch-f32 behaviour otherwise.
    w_ref[...] = lax.rsqrt(1.0 + _static_int_pow(y, order))


def build_sincgram_weights(freq_centers, bands, num_spectrogram_bins,
                           *, order, eps):
    K = freq_centers.shape[1]
    fc_col = jnp.reshape(freq_centers, (K, 1)).astype(jnp.float32)
    bands_col = jnp.reshape(bands, (K, 1)).astype(jnp.float32)
    return pl.pallas_call(
        functools.partial(sincgram_weights_kernel, order=order, eps=eps),
        out_shape=jax.ShapeDtypeStruct((K, num_spectrogram_bins), jnp.float32),
    )(fc_col, bands_col)


# -----------------------------------------------------------------------------
# Kernel 2: streaming matmul, W resident in VMEM, T lane-dense, bc-blocked.
# -----------------------------------------------------------------------------
def sincgram_matmul_kernel(w_ref, x_ref, o_ref):
    # w_ref : (K, F)               resident (constant index_map)
    # x_ref : (bc_blk, F, T_blk)
    # o_ref : (bc_blk, K, T_blk)
    # out[b, k, t] = sum_f W[k, f] * x[b, f, t]
    w = w_ref[...]
    bc_blk = x_ref.shape[0]
    for b in range(bc_blk):          # bc_blk is small & static -> unrolled
        o_ref[b] = lax.dot_general(
            w, x_ref[b],
            dimension_numbers=(((1,), (0,)), ((), ())),
            preferred_element_type=jnp.float32).astype(o_ref.dtype)


def _choose_tiles(BC, F, K, T):
    """Pick (bc_blk, t_blk).

    t_blk: lane-dense multiple of 128 up to 2048 (roofline plateau); the grid
    is a cdiv grid so T need not divide (ragged last block is masked).
    bc_blk: divisor of BC chosen so each step moves ~2 MiB when the T tile
    alone is small; capped at 16 (unroll length) and at half of BC when the
    T axis would otherwise give a single grid step (keeps >= 2 steps for
    pipelining / v7x megacore).  Per-step double-buffered VMEM stays well
    below v5e's 16 MiB scoped default, so no vmem_limit override is needed.
    """
    if T >= 128:
        t_blk = min(2048, (T // 128) * 128)
    else:
        t_blk = T  # full dim -> always a legal block shape

    step_bytes = 4 * (F + K) * t_blk          # x slab + out slab per bc
    cap = max(1, min(16, (2 * 1024 * 1024) // max(step_bytes, 1)))
    cap = min(cap, BC)
    if pl.cdiv(T, t_blk) == 1 and BC >= 2:
        cap = min(cap, BC // 2)               # keep >= 2 grid steps
    bc_blk = 1
    for d in range(1, cap + 1):
        if BC % d == 0:
            bc_blk = d
    return bc_blk, t_blk


def sincgram_forward(x, freq_centers, bands, *, order=10, eps=0.0):
    """x: (B, C, F, T) float32 -> (B, C, K, T) float32."""
    assert order % 2 == 0, "module always passes an even order (order * 2)"
    B, C, F, T = x.shape
    K = freq_centers.shape[1]
    # NOTE: eps == 0 with bands == -1 (zero-width band) divides by zero in W,
    # exactly as the torch module does.

    # Build the (K, F) weight matrix once (single tiny Pallas call).
    w = build_sincgram_weights(freq_centers, bands, F, order=order, eps=eps)

    # Flatten batch dims (free reshape).  No padding, no output slice: the
    # ragged last T block is handled by Pallas masking.
    BC = B * C
    xf = x.reshape(BC, F, T)
    bc_blk, t_blk = _choose_tiles(BC, F, K, T)
    grid = (BC // bc_blk, pl.cdiv(T, t_blk))

    out = pl.pallas_call(
        sincgram_matmul_kernel,
        out_shape=jax.ShapeDtypeStruct((BC, K, T), jnp.float32),
        grid_spec=pltpu.PrefetchScalarGridSpec(
            num_scalar_prefetch=0,
            grid=grid,
            in_specs=[
                # W: constant index_map -> DMA'd once, stays resident in VMEM.
                pl.BlockSpec((K, F), lambda bc, t: (0, 0)),
                # x: (bc_blk, F, t_blk) slab per step; F un-tiled so the full
                # contraction happens in one MXU pass.
                pl.BlockSpec((bc_blk, F, t_blk), lambda bc, t: (bc, 0, t)),
            ],
            out_specs=pl.BlockSpec((bc_blk, K, t_blk), lambda bc, t: (bc, 0, t)),
        ),
        compiler_params=pltpu.CompilerParams(
            dimension_semantics=("parallel", "parallel")),
    )(w, xf)

    return out.reshape(B, C, K, T)


# -----------------------------------------------------------------------------
# Reference (plain numpy, float32) for a sanity check.
# -----------------------------------------------------------------------------
def sincgram_reference(x, freq_centers, bands, *, order=10, eps=0.0):
    B, C, F, T = x.shape
    K = freq_centers.shape[1]
    mu = 0.25 - 2.0 / F
    beta = (bands[0] + 1.0) * mu / 2.0
    lin = np.linspace([-1.0] * K, [1.0] * K, F).astype(np.float32)
    y = (lin - freq_centers[0][None, :]) / (beta[None, :] + eps)
    w = (1.0 / np.sqrt(1.0 + y ** order)).astype(np.float32)
    # out[b,c,k,t] = sum_f x[b,c,f,t] * w[f,k]
    return np.einsum('bcft,fk->bckt', x, w)


if __name__ == "__main__":
    key = jax.random.PRNGKey(0)

    # ---- Case 1: small, self-consistent shapes (small-T / bc-blocked path).
    filters = 32                 # K
    num_spectrogram_bins = 128   # F
    sample_rate = 16000
    order = 5 * 2                # module stores order = order * 2
    eps = 0.0
    B, C, T = 2, 4, 16

    fc_np, bands_np = mel_init_params(filters, num_spectrogram_bins, sample_rate)
    freq_centers = jnp.asarray(fc_np)    # (1, K)
    bands = jnp.asarray(bands_np)        # (1, K)

    k1, k2 = jax.random.split(key)
    x = jax.random.normal(k1, (B, C, num_spectrogram_bins, T), dtype=jnp.float32)
    out = jax.block_until_ready(
        sincgram_forward(x, freq_centers, bands, order=order, eps=eps))
    ref = sincgram_reference(np.asarray(x), fc_np, bands_np, order=order, eps=eps)
    np.testing.assert_allclose(np.asarray(out), ref, rtol=1e-4, atol=1e-4)
    assert out.shape == (B, C, filters, T)

    # ---- Case 2: T not a multiple of 128 (exercises the ragged / cdiv path
    #      that replaced the old pad + slice).
    B2, C2, T2 = 1, 2, 200
    x2 = jax.random.normal(k2, (B2, C2, num_spectrogram_bins, T2),
                           dtype=jnp.float32)
    out2 = jax.block_until_ready(
        sincgram_forward(x2, freq_centers, bands, order=order, eps=eps))
    ref2 = sincgram_reference(np.asarray(x2), fc_np, bands_np,
                              order=order, eps=eps)
    np.testing.assert_allclose(np.asarray(out2), ref2, rtol=1e-4, atol=1e-4)
    assert out2.shape == (B2, C2, filters, T2)

    print("KERNEL_OK")
</pallas_src>

<mosaic_0001>
module attributes {stable_mosaic.version = 11 : i64} {
  func.func @sincgram_weights_kernel(%arg0: memref<32x1xf32, #tpu.memory_space<vmem>>, %arg1: memref<32x1xf32, #tpu.memory_space<vmem>>, %arg2: memref<32x128xf32, #tpu.memory_space<vmem>>) attributes {dimension_semantics = [], scalar_prefetch = 0 : i64, scratch_operands = 0 : i64, tpu.core_type = #tpu.core_type<tc>} {
    %c0 = arith.constant 0 : index
    %c0_0 = arith.constant 0 : index
    %0 = vector.load %arg0[%c0, %c0_0] : memref<32x1xf32, #tpu.memory_space<vmem>>, vector<32x1xf32>
    %c0_1 = arith.constant 0 : index
    %c0_2 = arith.constant 0 : index
    %1 = vector.load %arg1[%c0_1, %c0_2] : memref<32x1xf32, #tpu.memory_space<vmem>>, vector<32x1xf32>
    %cst = arith.constant 1.000000e+00 : f32
    %2 = vector.broadcast %cst : f32 to vector<32x1xf32>
    %3 = arith.addf %1, %2 : vector<32x1xf32>
    %cst_3 = arith.constant 0.1171875 : f32
    %4 = vector.broadcast %cst_3 : f32 to vector<32x1xf32>
    %5 = arith.mulf %3, %4 : vector<32x1xf32>
    %6 = tpu.iota {dimensions = array<i32: 1>} : vector<32x128xi32>
    %7 = arith.sitofp %6 : vector<32x128xi32> to vector<32x128xf32>
    %cst_4 = arith.constant 2.000000e+00 : f32
    %8 = vector.broadcast %cst_4 : f32 to vector<32x128xf32>
    %9 = arith.mulf %8, %7 : vector<32x128xf32>
    %cst_5 = arith.constant 1.270000e+02 : f32
    %10 = vector.broadcast %cst_5 : f32 to vector<32x128xf32>
    %11 = arith.subf %9, %10 : vector<32x128xf32>
    %cst_6 = arith.constant 0.00787401571 : f32
    %12 = vector.broadcast %cst_6 : f32 to vector<32x128xf32>
    %13 = arith.mulf %11, %12 : vector<32x128xf32>
    %14 = vector.broadcast %0 : vector<32x1xf32> to vector<32x128xf32>
    %15 = arith.subf %13, %14 : vector<32x128xf32>
    %cst_7 = arith.constant 0.000000e+00 : f32
    %16 = vector.broadcast %cst_7 : f32 to vector<32x1xf32>
    %17 = arith.addf %5, %16 : vector<32x1xf32>
    %18 = vector.broadcast %17 : vector<32x1xf32> to vector<32x128xf32>
    %19 = arith.divf %15, %18 : vector<32x128xf32>
    %20 = arith.mulf %19, %19 : vector<32x128xf32>
    %21 = arith.mulf %20, %20 : vector<32x128xf32>
    %22 = arith.mulf %21, %21 : vector<32x128xf32>
    %23 = arith.mulf %20, %22 : vector<32x128xf32>
    %cst_8 = arith.constant 1.000000e+00 : f32
    %24 = vector.broadcast %cst_8 : f32 to vector<32x128xf32>
    %25 = arith.addf %24, %23 : vector<32x128xf32>
    %26 = math.rsqrt %25 : vector<32x128xf32>
    %c0_9 = arith.constant 0 : index
    %c0_10 = arith.constant 0 : index
    %27 = vector.load %arg2[%c0_9, %c0_10] : memref<32x128xf32, #tpu.memory_space<vmem>>, vector<32x128xf32>
    tpu.vector_store %arg2[%c0_9, %c0_10], %26 {strides = array<i32>} : memref<32x128xf32, #tpu.memory_space<vmem>>, vector<32x128xf32>,
    return
  }
}

</mosaic_0001>

<llo_original>
// kernel: tpu_custom_call.1
$region0: #{tpu_custom_call.1}
  #allocation0 [shape = 'u32[]', space=smem, size = 0x4, offset = 0x4, fixed_abs, tag = 'smem constant byte address 0x4 - core index']
  #allocation1 [shape = 'u32[144,128]{1,0:T(1,128)}', space=vmem, size = 0x12000, scoped, tag = 'internal scratch']
  %s0 = inlined_call_operand.vmem [shape: f32[32,1], index: 0, kind: input, shape index: {}]
  %s1 = inlined_call_operand.vmem [shape: f32[32,1], index: 1, kind: input, shape index: {}]
  %s2 = inlined_call_operand.hbm [shape: f32[32,128], index: 2, kind: output, shape index: {}]
  %s3 = sld [smem:[#allocation0]]
  $region18: #{tpu_custom_call.1} parent=0
    _
  %s5 = ssub.s32 1, %s3
  %s6 = scalar_select 0, %s5, %s3
  $region1: #{tpu_custom_call.1} parent=0
    #allocation2 [shape = 'u8[16384]{0}', space=vmem, size = 0x4000, scoped, tag = 'output window, operand 0, single buffered']
    #allocation3 [shape = 's32[1]{0}', space=sflag, size = 0x4, scoped, tag = 'scoped memory for tpu_custom_call.1']
    %7 = vsyncpa [#allocation3], 0
    // Predicated region
    $region2: #{tpu_custom_call.1} parent=1 // pred_check
      _
    $region3: #{tpu_custom_call.1} parent=1 // pred_check_branch
      %9 = sbr.rel (0) target = $region5
    $region4: #{tpu_custom_call.1} parent=1 // pred_region
      _
    $region5: #{tpu_custom_call.1} parent=1 // pred_fallthru
      _
    // Predicated region
    $region6: #{tpu_custom_call.1} parent=1 // pred_check
      _
    $region7: #{tpu_custom_call.1} parent=1 // pred_check_branch
      %11 = sbr.rel (0) target = $region9
    $region8: #{tpu_custom_call.1} parent=1 // pred_region
      _
    $region9: #{tpu_custom_call.1} parent=1 // pred_fallthru
      _
    %v12 = vld [vmem:[%s0] sm:$0xff]
    %v13 = vld [vmem:[%s0 + $0x8] sm:$0xff]
    %v14 = vld [vmem:[%s0 + $0x10] sm:$0xff]
    %v15 = vld [vmem:[%s0 + $0x18] sm:$0xff]
    %v16 = vld [vmem:[%s1] sm:$0xff]
    %v17 = vld [vmem:[%s1 + $0x8] sm:$0xff]
    %v18 = vld [vmem:[%s1 + $0x10] sm:$0xff]
    %v19 = vld [vmem:[%s1 + $0x18] sm:$0xff]
    %v20 = vadd.f32 %v16, 1.0
    %v21 = vadd.f32 %v17, 1.0
    %v22 = vadd.f32 %v18, 1.0
    %v23 = vadd.f32 %v19, 1.0
    %v24 = vmul.f32 %v20, 0.1171875
    %v25 = vmul.f32 %v21, 0.1171875
    %v26 = vmul.f32 %v22, 0.1171875
    %v27 = vmul.f32 %v23, 0.1171875
    %v28 = vlaneseq
    %v29 = vand.u32 %v28, 127
    %v30 = vcvt.s32.f32 %v29
    %v31 = vmul.f32 %v30, 2.0
    %v32 = vsub.f32 %v31, 127.0
    %v33 = vmul.f32 %v32, 0.007874016
    %35 = vset.pattern.permute.xlu0 0
    %36 = vperm.xlu0 %35, %v12
    %v37 = vpop.permute.xlu0 %36
    %40 = vset.pattern.permute.xlu0 0
    %41 = vperm.xlu0 %40, %v13
    %v42 = vpop.permute.xlu0 %41
    %45 = vset.pattern.permute.xlu0 0
    %46 = vperm.xlu0 %45, %v14
    %v47 = vpop.permute.xlu0 %46
    %50 = vset.pattern.permute.xlu0 0
    %51 = vperm.xlu0 %50, %v15
    %v52 = vpop.permute.xlu0 %51
    %v54 = vsub.f32 %v33, %v37
    %v55 = vsub.f32 %v33, %v42
    %v56 = vsub.f32 %v33, %v47
    %v57 = vsub.f32 %v33, %v52
    %v58 = vadd.f32 %v24, 0.0
    %v59 = vadd.f32 %v25, 0.0
    %v60 = vadd.f32 %v26, 0.0
    %v61 = vadd.f32 %v27, 0.0
    %63 = vset.pattern.permute.xlu0 0
    %64 = vperm.xlu0 %63, %v58
    %v65 = vpop.permute.xlu0 %64
    %68 = vset.pattern.permute.xlu0 0
    %69 = vperm.xlu0 %68, %v59
    %v70 = vpop.permute.xlu0 %69
    %73 = vset.pattern.permute.xlu0 0
    %74 = vperm.xlu0 %73, %v60
    %v75 = vpop.permute.xlu0 %74
    %78 = vset.pattern.permute.xlu0 0
    %79 = vperm.xlu0 %78, %v61
    %v80 = vpop.permute.xlu0 %79
    %v82 = vrcp.pop %v65
    %v83 = vmul.f32 %v54, %v82
    %v84 = vrcp.pop %v70
    %v85 = vmul.f32 %v55, %v84
    %v86 = vrcp.pop %v75
    %v87 = vmul.f32 %v56, %v86
    %v88 = vrcp.pop %v80
    %v89 = vmul.f32 %v57, %v88
    %v90 = vmul.f32 %v83, %v83
    %v91 = vmul.f32 %v85, %v85
    %v92 = vmul.f32 %v87, %v87
    %v93 = vmul.f32 %v89, %v89
    %v94 = vmul.f32 %v90, %v90
    %v95 = vmul.f32 %v91, %v91
    %v96 = vmul.f32 %v92, %v92
    %v97 = vmul.f32 %v93, %v93
    %v98 = vmul.f32 %v94, %v94
    %v99 = vmul.f32 %v95, %v95
    %v100 = vmul.f32 %v96, %v96
    %v101 = vmul.f32 %v97, %v97
    %v102 = vmul.f32 %v90, %v98
    %v103 = vmul.f32 %v91, %v99
    %v104 = vmul.f32 %v92, %v100
    %v105 = vmul.f32 %v93, %v101
    %v106 = vadd.f32 %v102, 1.0
    %v107 = vadd.f32 %v103, 1.0
    %v108 = vadd.f32 %v104, 1.0
    %v109 = vadd.f32 %v105, 1.0
    %v110 = vrsqrt.pop %v106
    %v111 = vrsqrt.pop %v107
    %v112 = vrsqrt.pop %v108
    %v113 = vrsqrt.pop %v109
    %114 = vst [vmem:[#allocation2] sm:$0xff] %v110
    %115 = vst [vmem:[#allocation2 + $0x8] sm:$0xff] %v111
    %116 = vst [vmem:[#allocation2 + $0x10] sm:$0xff] %v112
    %117 = vst [vmem:[#allocation2 + $0x18] sm:$0xff] %v113
    // Predicated region
    $region10: #{tpu_custom_call.1} parent=1 // pred_check
      _
    $region11: #{tpu_custom_call.1} parent=1 // pred_check_branch
      %119 = sbr.rel (0) target = $region13
    $region12: #{tpu_custom_call.1} parent=1 // pred_region
      %s121 = ssub.s32 512, 512
      %122 = vsyncadd [#allocation3], %s121
      %s123 = sshll.u32 [#allocation2], 4
      %s124 = int_to_ptr.vmem [resolvable:$true] %s123
      %129 = dma.vmem_to_hbm [thread:$0]  %s124, 512, %s2, [#allocation3], 128, 128, 8
    $region13: #{tpu_custom_call.1} parent=1 // pred_fallthru
      _
    // Predicated region
    $region14: #{tpu_custom_call.1} parent=1 // pred_check
      _
    $region15: #{tpu_custom_call.1} parent=1 // pred_check_branch
      %131 = sbr.rel (0) target = $region17
    $region16: #{tpu_custom_call.1} parent=1 // pred_region
      %132 = dma.done [#allocation3], 512
    $region17: #{tpu_custom_call.1} parent=1 // pred_fallthru
      _
    %133 = vsyncpa [#allocation3], 1

</llo_original>
